<compile_context>
chip_gen: v7x
topology: tpu7x:2x2x1
jax: 0.10.0
libtpu: 0.0.40
codegen_flags: <defaults>
</compile_context>

<pallas_src>
import functools

import jax
import jax.numpy as jnp
import numpy as np
from jax.experimental import pallas as pl
from jax.experimental.pallas import tpu as pltpu


def _topk_kernel(x_ref, mask_ref, idx_ref, *, k: int):
    # x_ref:    (TM, N) input tile (upcast to f32 for the order-key bit trick)
    # mask_ref: (TM, N) bool output
    # idx_ref:  (TM, k) int32 output (descending by value)
    xf = x_ref[...].astype(jnp.float32)
    TM, N = xf.shape

    int_max = jnp.int32(jnp.iinfo(jnp.int32).max)
    knockout = jnp.int32(jnp.iinfo(jnp.int32).min)   # strictly below any real key

    # Monotone int32 order key: for float bits b, key = b (b >= 0) else
    # b ^ 0x7fffffff.  Then NaN -> INT32_MAX (torch ranks NaN above +inf) and
    # +/-0 -> 0 so a -0.0 / +0.0 tie breaks by position, like torch.
    b = pltpu.bitcast(xf, jnp.int32)
    key = jnp.where(b >= 0, b, b ^ int_max)
    key = jnp.where(xf == 0.0, jnp.int32(0), key)
    key = jnp.where(jnp.isnan(xf), int_max, key)

    lane = jax.lax.broadcasted_iota(jnp.int32, (TM, N), 1)

    # k is small and static: unrolled iterative arg-max in the int32 key domain.
    for j in range(k):
        m = jnp.max(key, axis=-1, keepdims=True)                       # (TM, 1)
        # First occurrence of the maximum (torch tie-breaking).  Knocked-out
        # lanes hold INT32_MIN < m, so they can never match.
        idx = jnp.min(jnp.where(key == m, lane, N),
                      axis=-1, keepdims=True)                           # (TM, 1)
        idx_ref[:, j:j + 1] = idx
        key = jnp.where(lane == idx, knockout, key)                     # knockout

    # Selected lanes are exactly the knocked-out ones.
    mask_ref[...] = key == knockout


def _vmem_config():
    # Per-generation VMEM sizing: leave headroom on v7x (64 MiB physical per
    # TensorCore); exploit the larger 128 MiB VMEM on v5e/v6e.
    try:
        cap = int(pltpu.get_tpu_info().vmem_capacity_bytes)
    except Exception:  # conservative (v7x-sized) fallback
        cap = 64 * 1024 * 1024
    limit = max(32 * 1024 * 1024, min(cap - 16 * 1024 * 1024, 96 * 1024 * 1024))
    budget = limit // 2               # working-set target used for row tiling
    return limit, budget


def _pick_row_tile(R: int, N: int, k: int, budget: int) -> int:
    # Rough per-row VMEM bytes: double-buffered f32 input (8N) + double-
    # buffered bool mask (2N) + key/lane int32 (8N) + ~3 live (TM, N) step
    # temporaries (~12N) + tiny idx buffers.
    bytes_per_row = 32 * N + 8 * k + 64
    t = max(1, budget // bytes_per_row)
    # Keep >= ~8 row-grid steps when R permits: megacore sharding (v7x) and
    # DMA/compute overlap need multiple grid steps.
    t = min(t, max(32, pl.cdiv(R, 8)))
    if t >= R:
        return R                       # single full-height block (== array dim)
    return max(32, (t // 32) * 32)     # bool mask tile: sublane multiple of 32


def topk_pallas(x: jax.Array, k: int, row_tile: int | None = None):
    if k < 1:
        raise ValueError("k must be ≥ 1")
    orig_shape = x.shape
    N = orig_shape[-1]
    if k > N:
        raise ValueError("k must be ≤ size of last dimension")
    R = int(np.prod(orig_shape[:-1])) if len(orig_shape) > 1 else 1
    x2 = x.reshape(R, N)

    vmem_limit, budget = _vmem_config()
    if row_tile is None:
        row_tile = _pick_row_tile(R, N, k, budget)
    grid = (pl.cdiv(R, row_tile),)

    mask2, idx2 = pl.pallas_call(
        functools.partial(_topk_kernel, k=k),
        out_shape=(
            jax.ShapeDtypeStruct((R, N), jnp.bool_),
            jax.ShapeDtypeStruct((R, k), jnp.int32),
        ),
        grid=grid,
        in_specs=[pl.BlockSpec((row_tile, N), lambda i: (i, 0))],
        out_specs=(
            pl.BlockSpec((row_tile, N), lambda i: (i, 0)),
            pl.BlockSpec((row_tile, k), lambda i: (i, 0)),
        ),
        compiler_params=pltpu.CompilerParams(
            dimension_semantics=("parallel",),
            vmem_limit_bytes=vmem_limit,
        ),
    )(x2)

    mask = mask2.reshape(orig_shape)
    idx = idx2.reshape(orig_shape[:-1] + (k,))
    return mask, idx


def _ref_topk(x, k):
    """Torch-faithful reference: k largest, descending, stable (first-occurrence
    tie break).  Test inputs contain no NaN."""
    xn = np.asarray(x)
    order = np.argsort(-xn, axis=-1, kind="stable")
    idx = order[..., :k].astype(np.int32)
    mask = np.zeros(xn.shape, dtype=bool)
    np.put_along_axis(mask, idx, True, axis=-1)
    return mask, idx


if __name__ == "__main__":
    # Primary check: small activation tensor, top-k over the hidden dim.
    k = 4
    x = jax.random.normal(jax.random.PRNGKey(0), (2, 8, 32), dtype=jnp.float32)
    mask, idx = topk_pallas(x, k)
    jax.block_until_ready((mask, idx))

    ref_mask, ref_idx = _ref_topk(x, k)
    assert mask.dtype == jnp.bool_ and mask.shape == x.shape
    assert idx.shape == x.shape[:-1] + (k,)
    assert np.array_equal(np.asarray(idx), ref_idx), "indices mismatch"
    assert np.array_equal(np.asarray(mask), ref_mask), "mask mismatch"
    assert bool(jnp.all(mask.sum(-1) == k)), "mask popcount mismatch"

    # Secondary check: lane dim not a multiple of 128, duplicate values
    # (first-occurrence tie break) and +/-inf values.
    k2 = 7
    x2 = jax.random.normal(jax.random.PRNGKey(1), (3, 5, 200), dtype=jnp.float32)
    x2 = jnp.round(x2 * 4.0) / 4.0                 # force exact duplicates
    x2 = x2.at[0, 0, 3].set(jnp.inf).at[0, 0, 77].set(jnp.inf)
    x2 = x2.at[1, 2, 10].set(-jnp.inf)
    m2, i2 = topk_pallas(x2, k2)
    jax.block_until_ready((m2, i2))
    rm2, ri2 = _ref_topk(x2, k2)
    assert np.array_equal(np.asarray(i2), ri2), "indices mismatch (N=200)"
    assert np.array_equal(np.asarray(m2), rm2), "mask mismatch (N=200)"
    assert bool(jnp.all(m2.sum(-1) == k2)), "mask popcount mismatch (N=200)"

    print("KERNEL_OK")
</pallas_src>

<mosaic_0001>
module attributes {stable_mosaic.version = 11 : i64} {
  func.func @_topk_kernel(%arg0: i32, %arg1: memref<16x32xf32, #tpu.memory_space<vmem>>, %arg2: memref<16x32xi32, #tpu.memory_space<vmem>>, %arg3: memref<16x4xi32, #tpu.memory_space<vmem>>) attributes {dimension_semantics = [#tpu.dimension_semantics<parallel>], iteration_bounds = array<i64: 1>, scalar_prefetch = 0 : i64, scratch_operands = 0 : i64, tpu.core_type = #tpu.core_type<tc>, window_params = [{transform_indices = @transform_0, window_bounds = array<i64: 16, 32>}, {transform_indices = @transform_1, window_bounds = array<i64: 16, 32>}, {transform_indices = @transform_2, window_bounds = array<i64: 16, 4>}]} {
    %c0 = arith.constant 0 : index
    %c0_0 = arith.constant 0 : index
    %0 = vector.load %arg1[%c0, %c0_0] : memref<16x32xf32, #tpu.memory_space<vmem>>, vector<16x32xf32>
    %1 = tpu.bitcast %0 : vector<16x32xf32> -> vector<16x32xi32>
    %c0_i32 = arith.constant 0 : i32
    %2 = vector.broadcast %c0_i32 : i32 to vector<16x32xi32>
    %3 = arith.cmpi sge, %1, %2 : vector<16x32xi32>
    %c2147483647_i32 = arith.constant 2147483647 : i32
    %4 = vector.broadcast %c2147483647_i32 : i32 to vector<16x32xi32>
    %5 = arith.xori %1, %4 : vector<16x32xi32>
    %6 = arith.select %3, %1, %5 : vector<16x32xi1>, vector<16x32xi32>
    %cst = arith.constant 0.000000e+00 : f32
    %7 = vector.broadcast %cst : f32 to vector<16x32xf32>
    %8 = arith.cmpf oeq, %0, %7 : vector<16x32xf32>
    %c0_i32_1 = arith.constant 0 : i32
    %9 = vector.broadcast %c0_i32_1 : i32 to vector<16x32xi32>
    %10 = arith.select %8, %9, %6 : vector<16x32xi1>, vector<16x32xi32>
    %11 = arith.cmpf one, %0, %0 : vector<16x32xf32>
    %c2147483647_i32_2 = arith.constant 2147483647 : i32
    %12 = vector.broadcast %c2147483647_i32_2 : i32 to vector<16x32xi32>
    %13 = arith.select %11, %12, %10 : vector<16x32xi1>, vector<16x32xi32>
    %14 = tpu.iota {dimensions = array<i32: 1>} : vector<16x32xi32>
    %cst_3 = arith.constant dense<-2147483648> : vector<16xi32>
    %15 = vector.multi_reduction <maxsi>, %13, %cst_3 [1] : vector<16x32xi32> to vector<16xi32>
    %16 = vector.shape_cast %15 : vector<16xi32> to vector<16x1xi32>
    %17 = vector.broadcast %16 : vector<16x1xi32> to vector<16x32xi32>
    %18 = arith.cmpi eq, %13, %17 : vector<16x32xi32>
    %c32_i32 = arith.constant 32 : i32
    %19 = vector.broadcast %c32_i32 : i32 to vector<16x32xi32>
    %20 = arith.select %18, %14, %19 : vector<16x32xi1>, vector<16x32xi32>
    %cst_4 = arith.constant dense<2147483647> : vector<16xi32>
    %21 = vector.multi_reduction <minsi>, %20, %cst_4 [1] : vector<16x32xi32> to vector<16xi32>
    %22 = vector.shape_cast %21 : vector<16xi32> to vector<16x1xi32>
    %c0_5 = arith.constant 0 : index
    %c0_6 = arith.constant 0 : index
    %23 = vector.load %arg3[%c0_5, %c0_6] : memref<16x4xi32, #tpu.memory_space<vmem>>, vector<16x1xi32>
    tpu.vector_store %arg3[%c0_5, %c0_6], %22 {strides = array<i32>} : memref<16x4xi32, #tpu.memory_space<vmem>>, vector<16x1xi32>,
    %24 = vector.broadcast %22 : vector<16x1xi32> to vector<16x32xi32>
    %25 = arith.cmpi eq, %14, %24 : vector<16x32xi32>
    %c-2147483648_i32 = arith.constant -2147483648 : i32
    %26 = vector.broadcast %c-2147483648_i32 : i32 to vector<16x32xi32>
    %27 = arith.select %25, %26, %13 : vector<16x32xi1>, vector<16x32xi32>
    %cst_7 = arith.constant dense<-2147483648> : vector<16xi32>
    %28 = vector.multi_reduction <maxsi>, %27, %cst_7 [1] : vector<16x32xi32> to vector<16xi32>
    %29 = vector.shape_cast %28 : vector<16xi32> to vector<16x1xi32>
    %30 = vector.broadcast %29 : vector<16x1xi32> to vector<16x32xi32>
    %31 = arith.cmpi eq, %27, %30 : vector<16x32xi32>
    %c32_i32_8 = arith.constant 32 : i32
    %32 = vector.broadcast %c32_i32_8 : i32 to vector<16x32xi32>
    %33 = arith.select %31, %14, %32 : vector<16x32xi1>, vector<16x32xi32>
    %cst_9 = arith.constant dense<2147483647> : vector<16xi32>
    %34 = vector.multi_reduction <minsi>, %33, %cst_9 [1] : vector<16x32xi32> to vector<16xi32>
    %35 = vector.shape_cast %34 : vector<16xi32> to vector<16x1xi32>
    %c0_10 = arith.constant 0 : index
    %c1 = arith.constant 1 : index
    %36 = vector.load %arg3[%c0_10, %c1] : memref<16x4xi32, #tpu.memory_space<vmem>>, vector<16x1xi32>
    tpu.vector_store %arg3[%c0_10, %c1], %35 {strides = array<i32>} : memref<16x4xi32, #tpu.memory_space<vmem>>, vector<16x1xi32>,
    %37 = vector.broadcast %35 : vector<16x1xi32> to vector<16x32xi32>
    %38 = arith.cmpi eq, %14, %37 : vector<16x32xi32>
    %c-2147483648_i32_11 = arith.constant -2147483648 : i32
    %39 = vector.broadcast %c-2147483648_i32_11 : i32 to vector<16x32xi32>
    %40 = arith.select %38, %39, %27 : vector<16x32xi1>, vector<16x32xi32>
    %cst_12 = arith.constant dense<-2147483648> : vector<16xi32>
    %41 = vector.multi_reduction <maxsi>, %40, %cst_12 [1] : vector<16x32xi32> to vector<16xi32>
    %42 = vector.shape_cast %41 : vector<16xi32> to vector<16x1xi32>
    %43 = vector.broadcast %42 : vector<16x1xi32> to vector<16x32xi32>
    %44 = arith.cmpi eq, %40, %43 : vector<16x32xi32>
    %c32_i32_13 = arith.constant 32 : i32
    %45 = vector.broadcast %c32_i32_13 : i32 to vector<16x32xi32>
    %46 = arith.select %44, %14, %45 : vector<16x32xi1>, vector<16x32xi32>
    %cst_14 = arith.constant dense<2147483647> : vector<16xi32>
    %47 = vector.multi_reduction <minsi>, %46, %cst_14 [1] : vector<16x32xi32> to vector<16xi32>
    %48 = vector.shape_cast %47 : vector<16xi32> to vector<16x1xi32>
    %c0_15 = arith.constant 0 : index
    %c2 = arith.constant 2 : index
    %49 = vector.load %arg3[%c0_15, %c2] : memref<16x4xi32, #tpu.memory_space<vmem>>, vector<16x1xi32>
    tpu.vector_store %arg3[%c0_15, %c2], %48 {strides = array<i32>} : memref<16x4xi32, #tpu.memory_space<vmem>>, vector<16x1xi32>,
    %50 = vector.broadcast %48 : vector<16x1xi32> to vector<16x32xi32>
    %51 = arith.cmpi eq, %14, %50 : vector<16x32xi32>
    %c-2147483648_i32_16 = arith.constant -2147483648 : i32
    %52 = vector.broadcast %c-2147483648_i32_16 : i32 to vector<16x32xi32>
    %53 = arith.select %51, %52, %40 : vector<16x32xi1>, vector<16x32xi32>
    %cst_17 = arith.constant dense<-2147483648> : vector<16xi32>
    %54 = vector.multi_reduction <maxsi>, %53, %cst_17 [1] : vector<16x32xi32> to vector<16xi32>
    %55 = vector.shape_cast %54 : vector<16xi32> to vector<16x1xi32>
    %56 = vector.broadcast %55 : vector<16x1xi32> to vector<16x32xi32>
    %57 = arith.cmpi eq, %53, %56 : vector<16x32xi32>
    %c32_i32_18 = arith.constant 32 : i32
    %58 = vector.broadcast %c32_i32_18 : i32 to vector<16x32xi32>
    %59 = arith.select %57, %14, %58 : vector<16x32xi1>, vector<16x32xi32>
    %cst_19 = arith.constant dense<2147483647> : vector<16xi32>
    %60 = vector.multi_reduction <minsi>, %59, %cst_19 [1] : vector<16x32xi32> to vector<16xi32>
    %61 = vector.shape_cast %60 : vector<16xi32> to vector<16x1xi32>
    %c0_20 = arith.constant 0 : index
    %c3 = arith.constant 3 : index
    %62 = vector.load %arg3[%c0_20, %c3] : memref<16x4xi32, #tpu.memory_space<vmem>>, vector<16x1xi32>
    tpu.vector_store %arg3[%c0_20, %c3], %61 {strides = array<i32>} : memref<16x4xi32, #tpu.memory_space<vmem>>, vector<16x1xi32>,
    %63 = vector.broadcast %61 : vector<16x1xi32> to vector<16x32xi32>
    %64 = arith.cmpi eq, %14, %63 : vector<16x32xi32>
    %c-2147483648_i32_21 = arith.constant -2147483648 : i32
    %65 = vector.broadcast %c-2147483648_i32_21 : i32 to vector<16x32xi32>
    %66 = arith.select %64, %65, %53 : vector<16x32xi1>, vector<16x32xi32>
    %c-2147483648_i32_22 = arith.constant -2147483648 : i32
    %67 = vector.broadcast %c-2147483648_i32_22 : i32 to vector<16x32xi32>
    %68 = arith.cmpi eq, %66, %67 : vector<16x32xi32>
    %c0_23 = arith.constant 0 : index
    %c0_24 = arith.constant 0 : index
    %69 = vector.load %arg2[%c0_23, %c0_24] : memref<16x32xi32, #tpu.memory_space<vmem>>, vector<16x32xi32>
    %70 = arith.extui %68 : vector<16x32xi1> to vector<16x32xi32>
    %cst_25 = arith.constant dense<0> : vector<16x32xi32>
    %71 = arith.cmpi ne, %69, %cst_25 : vector<16x32xi32>
    tpu.vector_store %arg2[%c0_23, %c0_24], %70 {strides = array<i32>} : memref<16x32xi32, #tpu.memory_space<vmem>>, vector<16x32xi32>,
    return
  }
  func.func @transform_0(%arg0: i32) -> (i32, i32) {
    %c0_i32 = arith.constant 0 : i32
    %c0_i32_0 = arith.constant 0 : i32
    return %arg0, %c0_i32 : i32, i32
  }
  func.func @transform_1(%arg0: i32) -> (i32, i32) {
    %c0_i32 = arith.constant 0 : i32
    %c0_i32_0 = arith.constant 0 : i32
    return %arg0, %c0_i32 : i32, i32
  }
  func.func @transform_2(%arg0: i32) -> (i32, i32) {
    %c0_i32 = arith.constant 0 : i32
    %c0_i32_0 = arith.constant 0 : i32
    return %arg0, %c0_i32 : i32, i32
  }
}

</mosaic_0001>

<llo_original>
// kernel: tpu_custom_call.1
$region0: #{tpu_custom_call.1}
  #allocation0 [shape = 'u32[]', space=smem, size = 0x4, offset = 0x4, fixed_abs, tag = 'smem constant byte address 0x4 - core index']
  #allocation1 [shape = 'u32[144,128]{1,0:T(1,128)}', space=vmem, size = 0x12000, scoped, tag = 'internal scratch']
  %s0 = inlined_call_operand.hbm [shape: f32[16,32], index: 0, kind: input, shape index: {}]
  %s1 = inlined_call_operand.vmem [shape: s32[16,32], index: 1, kind: output, shape index: {0}]
  %s2 = inlined_call_operand.vmem [shape: s32[16,4], index: 2, kind: output, shape index: {1}]
  %3 = xla_tuple %s1, %s2
  %s4 = sld [smem:[#allocation0]]
  $region26: #{tpu_custom_call.1} parent=0
    _
  %s6 = ssub.s32 1, %s4
  %s7 = scalar_select 0, %s6, %s4
  $region1: #{tpu_custom_call.1} parent=0
    #allocation2 [shape = 'u8[8192]{0}', space=vmem, size = 0x2000, scoped, tag = 'input window, operand 0, single buffered']
    #allocation3 [shape = 's32[1]{0}', space=sflag, size = 0x4, scoped, tag = 'scoped memory for tpu_custom_call.1']
    %8 = vsyncpa [#allocation3], 0
    // Predicated region
    $region2: #{tpu_custom_call.1} parent=1 // pred_check
      _
    $region3: #{tpu_custom_call.1} parent=1 // pred_check_branch
      %10 = sbr.rel (0) target = $region5
    $region4: #{tpu_custom_call.1} parent=1 // pred_region
      %s12 = ssub.s32 256, 256
      %13 = vsyncadd [#allocation3], %s12
      %s14 = sshll.u32 [#allocation2], 4
      %s15 = int_to_ptr.vmem [resolvable:$true] %s14
      %20 = dma.hbm_to_vmem [thread:$0]  %s0, 256, %s15, [#allocation3], 128, 128, 8
    $region5: #{tpu_custom_call.1} parent=1 // pred_fallthru
      _
    // Predicated region
    $region6: #{tpu_custom_call.1} parent=1 // pred_check
      _
    $region7: #{tpu_custom_call.1} parent=1 // pred_check_branch
      %22 = sbr.rel (0) target = $region9
    $region8: #{tpu_custom_call.1} parent=1 // pred_region
      %23 = dma.done [#allocation3], 256
    $region9: #{tpu_custom_call.1} parent=1 // pred_fallthru
      _
    %v24 = vld [vmem:[#allocation2] sm:$0xff]
    %v25 = vld [vmem:[#allocation2 + $0x8] sm:$0xff]
    %vm28 = vcmp.ge.s32.totalorder %v24, 0
    %vm29 = vcmp.ge.s32.totalorder %v25, 0
    %v30 = vxor.u32 %v24, 2147483647
    %v31 = vxor.u32 %v25, 2147483647
    %v32 = vsel %vm28, %v24, %v30
    %v33 = vsel %vm29, %v25, %v31
    %vm34 = vcmp.eq.f32.partialorder %v24, 0.0
    %vm35 = vcmp.eq.f32.partialorder %v25, 0.0
    %v36 = vsel %vm34, 0, %v32
    %v37 = vsel %vm35, 0, %v33
    %vm38 = vcmp.ne.f32.partialorder %v24, %v24
    %vm39 = vcmp.ne.f32.partialorder %v25, %v25
    %v40 = vsel %vm38, 2147483647, %v36
    %v41 = vsel %vm39, 2147483647, %v37
    %v42 = vlaneseq
    %v43 = vand.u32 %v42, 127
    %vm44 = vcmask 261120
    %v45 = vsel %vm44, %v40, 2147483648
    %v46 = vand.u32 %v45, 65535
    %v47 = vshra.s32 %v45, 16
    %v48 = vcvt.s32.f32 %v46
    %v49 = vcvt.s32.f32 %v47
    %50 = vmax.xlane.f32.xlu0 %v49
    %v51 = vpop.xlane.xlu0 %50
    %vm52 = vcmp.eq.f32.partialorder %v49, %v51
    %v53 = vsel %vm52, %v48, -inf
    %54 = vmax.xlane.f32.xlu0 %v53
    %v55 = vpop.xlane.xlu0 %54
    %v56 = vcvt.f32.s32 %v55
    %v57 = vcvt.f32.s32 %v51
    %v58 = vshll.u32 %v57, 16
    %v59 = vadd.s32 %v58, %v56
    %v60 = vsel %vm44, %v41, 2147483648
    %v61 = vand.u32 %v60, 65535
    %v62 = vshra.s32 %v60, 16
    %v63 = vcvt.s32.f32 %v61
    %v64 = vcvt.s32.f32 %v62
    %65 = vmax.xlane.f32.xlu0 %v64
    %v66 = vpop.xlane.xlu0 %65
    %vm67 = vcmp.eq.f32.partialorder %v64, %v66
    %v68 = vsel %vm67, %v63, -inf
    %69 = vmax.xlane.f32.xlu0 %v68
    %v70 = vpop.xlane.xlu0 %69
    %v71 = vcvt.f32.s32 %v70
    %v72 = vcvt.f32.s32 %v66
    %v73 = vshll.u32 %v72, 16
    %v74 = vadd.s32 %v73, %v71
    %vm75 = vcmp.eq.s32.totalorder %v40, %v59
    %vm76 = vcmp.eq.s32.totalorder %v41, %v74
    %v77 = vsel %vm75, %v43, 32
    %v78 = vsel %vm76, %v43, 32
    %v79 = vsel %vm44, %v77, 2147483647
    %v80 = vand.u32 %v79, 65535
    %v81 = vshra.s32 %v79, 16
    %v82 = vcvt.s32.f32 %v80
    %v83 = vcvt.s32.f32 %v81
    %84 = vmin.xlane.f32.xlu0 %v83
    %v85 = vpop.xlane.xlu0 %84
    %vm86 = vcmp.eq.f32.partialorder %v83, %v85
    %v87 = vsel %vm86, %v82, inf
    %88 = vmin.xlane.f32.xlu0 %v87
    %v89 = vpop.xlane.xlu0 %88
    %v90 = vcvt.f32.s32 %v89
    %v91 = vcvt.f32.s32 %v85
    %v92 = vshll.u32 %v91, 16
    %v93 = vadd.s32 %v92, %v90
    %v94 = vsel %vm44, %v78, 2147483647
    %v95 = vand.u32 %v94, 65535
    %v96 = vshra.s32 %v94, 16
    %v97 = vcvt.s32.f32 %v95
    %v98 = vcvt.s32.f32 %v96
    %99 = vmin.xlane.f32.xlu0 %v98
    %v100 = vpop.xlane.xlu0 %99
    %vm101 = vcmp.eq.f32.partialorder %v98, %v100
    %v102 = vsel %vm101, %v97, inf
    %103 = vmin.xlane.f32.xlu0 %v102
    %v104 = vpop.xlane.xlu0 %103
    %v105 = vcvt.f32.s32 %v104
    %v106 = vcvt.f32.s32 %v100
    %v107 = vshll.u32 %v106, 16
    %v108 = vadd.s32 %v107, %v105
    %vm109 = vcmask 7168
    %110 = vst.msk [vmem:[%s2] sm:$0xff] %vm109, %v93
    %111 = vst.msk [vmem:[%s2 + $0x8] sm:$0xff] %vm109, %v108
    %vm112 = vcmp.eq.s32.totalorder %v43, %v93
    %vm113 = vcmp.eq.s32.totalorder %v43, %v108
    %v114 = vsel %vm112, 2147483648, %v40
    %v115 = vsel %vm113, 2147483648, %v41
    %v116 = vsel %vm44, %v114, 2147483648
    %v117 = vand.u32 %v116, 65535
    %v118 = vshra.s32 %v116, 16
    %v119 = vcvt.s32.f32 %v117
    %v120 = vcvt.s32.f32 %v118
    %121 = vmax.xlane.f32.xlu0 %v120
    %v122 = vpop.xlane.xlu0 %121
    %vm123 = vcmp.eq.f32.partialorder %v120, %v122
    %v124 = vsel %vm123, %v119, -inf
    %125 = vmax.xlane.f32.xlu0 %v124
    %v126 = vpop.xlane.xlu0 %125
    %v127 = vcvt.f32.s32 %v126
    %v128 = vcvt.f32.s32 %v122
    %v129 = vshll.u32 %v128, 16
    %v130 = vadd.s32 %v129, %v127
    %v131 = vsel %vm44, %v115, 2147483648
    %v132 = vand.u32 %v131, 65535
    %v133 = vshra.s32 %v131, 16
    %v134 = vcvt.s32.f32 %v132
    %v135 = vcvt.s32.f32 %v133
    %136 = vmax.xlane.f32.xlu0 %v135
    %v137 = vpop.xlane.xlu0 %136
    %vm138 = vcmp.eq.f32.partialorder %v135, %v137
    %v139 = vsel %vm138, %v134, -inf
    %140 = vmax.xlane.f32.xlu0 %v139
    %v141 = vpop.xlane.xlu0 %140
    %v142 = vcvt.f32.s32 %v141
    %v143 = vcvt.f32.s32 %v137
    %v144 = vshll.u32 %v143, 16
    %v145 = vadd.s32 %v144, %v142
    %vm146 = vcmp.eq.s32.totalorder %v114, %v130
    %vm147 = vcmp.eq.s32.totalorder %v115, %v145
    %v148 = vsel %vm146, %v43, 32
    %v149 = vsel %vm147, %v43, 32
    %v150 = vsel %vm44, %v148, 2147483647
    %v151 = vand.u32 %v150, 65535
    %v152 = vshra.s32 %v150, 16
    %v153 = vcvt.s32.f32 %v151
    %v154 = vcvt.s32.f32 %v152
    %155 = vmin.xlane.f32.xlu0 %v154
    %v156 = vpop.xlane.xlu0 %155
    %vm157 = vcmp.eq.f32.partialorder %v154, %v156
    %v158 = vsel %vm157, %v153, inf
    %159 = vmin.xlane.f32.xlu0 %v158
    %v160 = vpop.xlane.xlu0 %159
    %v161 = vcvt.f32.s32 %v160
    %v162 = vcvt.f32.s32 %v156
    %v163 = vshll.u32 %v162, 16
    %v164 = vadd.s32 %v163, %v161
    %v165 = vsel %vm44, %v149, 2147483647
    %v166 = vand.u32 %v165, 65535
    %v167 = vshra.s32 %v165, 16
    %v168 = vcvt.s32.f32 %v166
    %v169 = vcvt.s32.f32 %v167
    %170 = vmin.xlane.f32.xlu0 %v169
    %v171 = vpop.xlane.xlu0 %170
    %vm172 = vcmp.eq.f32.partialorder %v169, %v171
    %v173 = vsel %vm172, %v168, inf
    %174 = vmin.xlane.f32.xlu0 %v173
    %v175 = vpop.xlane.xlu0 %174
    %v176 = vcvt.f32.s32 %v175
    %v177 = vcvt.f32.s32 %v171
    %v178 = vshll.u32 %v177, 16
    %v179 = vadd.s32 %v178, %v176
    %vm180 = vcmask 15368
    %181 = vst.msk [vmem:[%s2] sm:$0xff] %vm180, %v164
    %182 = vst.msk [vmem:[%s2 + $0x8] sm:$0xff] %vm180, %v179
    %vm183 = vcmp.eq.s32.totalorder %v43, %v164
    %vm184 = vcmp.eq.s32.totalorder %v43, %v179
    %v185 = vsel %vm183, 2147483648, %v114
    %v186 = vsel %vm184, 2147483648, %v115
    %v187 = vsel %vm44, %v185, 2147483648
    %v188 = vand.u32 %v187, 65535
    %v189 = vshra.s32 %v187, 16
    %v190 = vcvt.s32.f32 %v188
    %v191 = vcvt.s32.f32 %v189
    %192 = vmax.xlane.f32.xlu0 %v191
    %v193 = vpop.xlane.xlu0 %192
    %vm194 = vcmp.eq.f32.partialorder %v191, %v193
    %v195 = vsel %vm194, %v190, -inf
    %196 = vmax.xlane.f32.xlu0 %v195
    %v197 = vpop.xlane.xlu0 %196
    %v198 = vcvt.f32.s32 %v197
    %v199 = vcvt.f32.s32 %v193
    %v200 = vshll.u32 %v199, 16
    %v201 = vadd.s32 %v200, %v198
    %v202 = vsel %vm44, %v186, 2147483648
    %v203 = vand.u32 %v202, 65535
    %v204 = vshra.s32 %v202, 16
    %v205 = vcvt.s32.f32 %v203
    %v206 = vcvt.s32.f32 %v204
    %207 = vmax.xlane.f32.xlu0 %v206
    %v208 = vpop.xlane.xlu0 %207
    %vm209 = vcmp.eq.f32.partialorder %v206, %v208
    %v210 = vsel %vm209, %v205, -inf
    %211 = vmax.xlane.f32.xlu0 %v210
    %v212 = vpop.xlane.xlu0 %211
    %v213 = vcvt.f32.s32 %v212
    %v214 = vcvt.f32.s32 %v208
    %v215 = vshll.u32 %v214, 16
    %v216 = vadd.s32 %v215, %v213
    %vm217 = vcmp.eq.s32.totalorder %v185, %v201
    %vm218 = vcmp.eq.s32.totalorder %v186, %v216
    %v219 = vsel %vm217, %v43, 32
    %v220 = vsel %vm218, %v43, 32
    %v221 = vsel %vm44, %v219, 2147483647
    %v222 = vand.u32 %v221, 65535
    %v223 = vshra.s32 %v221, 16
    %v224 = vcvt.s32.f32 %v222
    %v225 = vcvt.s32.f32 %v223
    %226 = vmin.xlane.f32.xlu0 %v225
    %v227 = vpop.xlane.xlu0 %226
    %vm228 = vcmp.eq.f32.partialorder %v225, %v227
    %v229 = vsel %vm228, %v224, inf
    %230 = vmin.xlane.f32.xlu0 %v229
    %v231 = vpop.xlane.xlu0 %230
    %v232 = vcvt.f32.s32 %v231
    %v233 = vcvt.f32.s32 %v227
    %v234 = vshll.u32 %v233, 16
    %v235 = vadd.s32 %v234, %v232
    %v236 = vsel %vm44, %v220, 2147483647
    %v237 = vand.u32 %v236, 65535
    %v238 = vshra.s32 %v236, 16
    %v239 = vcvt.s32.f32 %v237
    %v240 = vcvt.s32.f32 %v238
    %241 = vmin.xlane.f32.xlu0 %v240
    %v242 = vpop.xlane.xlu0 %241
    %vm243 = vcmp.eq.f32.partialorder %v240, %v242
    %v244 = vsel %vm243, %v239, inf
    %245 = vmin.xlane.f32.xlu0 %v244
    %v246 = vpop.xlane.xlu0 %245
    %v247 = vcvt.f32.s32 %v246
    %v248 = vcvt.f32.s32 %v242
    %v249 = vshll.u32 %v248, 16
    %v250 = vadd.s32 %v249, %v247
    %vm251 = vcmask 23568
    %252 = vst.msk [vmem:[%s2] sm:$0xff] %vm251, %v235
    %253 = vst.msk [vmem:[%s2 + $0x8] sm:$0xff] %vm251, %v250
    %vm254 = vcmp.eq.s32.totalorder %v43, %v235
    %vm255 = vcmp.eq.s32.totalorder %v43, %v250
    %v256 = vsel %vm254, 2147483648, %v185
    %v257 = vsel %vm255, 2147483648, %v186
    %v258 = vsel %vm44, %v256, 2147483648
    %v259 = vand.u32 %v258, 65535
    %v260 = vshra.s32 %v258, 16
    %v261 = vcvt.s32.f32 %v259
    %v262 = vcvt.s32.f32 %v260
    %263 = vmax.xlane.f32.xlu0 %v262
    %v264 = vpop.xlane.xlu0 %263
    %vm265 = vcmp.eq.f32.partialorder %v262, %v264
    %v266 = vsel %vm265, %v261, -inf
    %267 = vmax.xlane.f32.xlu0 %v266
    %v268 = vpop.xlane.xlu0 %267
    %v269 = vcvt.f32.s32 %v268
    %v270 = vcvt.f32.s32 %v264
    %v271 = vshll.u32 %v270, 16
    %v272 = vadd.s32 %v271, %v269
    %v273 = vsel %vm44, %v257, 2147483648
    %v274 = vand.u32 %v273, 65535
    %v275 = vshra.s32 %v273, 16
    %v276 = vcvt.s32.f32 %v274
    %v277 = vcvt.s32.f32 %v275
    %278 = vmax.xlane.f32.xlu0 %v277
    %v279 = vpop.xlane.xlu0 %278
    %vm280 = vcmp.eq.f32.partialorder %v277, %v279
    %v281 = vsel %vm280, %v276, -inf
    %282 = vmax.xlane.f32.xlu0 %v281
    %v283 = vpop.xlane.xlu0 %282
    %v284 = vcvt.f32.s32 %v283
    %v285 = vcvt.f32.s32 %v279
    %v286 = vshll.u32 %v285, 16
    %v287 = vadd.s32 %v286, %v284
    %vm288 = vcmp.eq.s32.totalorder %v256, %v272
    %vm289 = vcmp.eq.s32.totalorder %v257, %v287
    %v290 = vsel %vm288, %v43, 32
    %v291 = vsel %vm289, %v43, 32
    %v292 = vsel %vm44, %v290, 2147483647
    %v293 = vand.u32 %v292, 65535
    %v294 = vshra.s32 %v292, 16
    %v295 = vcvt.s32.f32 %v293
    %v296 = vcvt.s32.f32 %v294
    %297 = vmin.xlane.f32.xlu0 %v296
    %v298 = vpop.xlane.xlu0 %297
    %vm299 = vcmp.eq.f32.partialorder %v296, %v298
    %v300 = vsel %vm299, %v295, inf
    %301 = vmin.xlane.f32.xlu0 %v300
    %v302 = vpop.xlane.xlu0 %301
    %v303 = vcvt.f32.s32 %v302
    %v304 = vcvt.f32.s32 %v298
    %v305 = vshll.u32 %v304, 16
    %v306 = vadd.s32 %v305, %v303
    %v307 = vsel %vm44, %v291, 2147483647
    %v308 = vand.u32 %v307, 65535
    %v309 = vshra.s32 %v307, 16
    %v310 = vcvt.s32.f32 %v308
    %v311 = vcvt.s32.f32 %v309
    %312 = vmin.xlane.f32.xlu0 %v311
    %v313 = vpop.xlane.xlu0 %312
    %vm314 = vcmp.eq.f32.partialorder %v311, %v313
    %v315 = vsel %vm314, %v310, inf
    %316 = vmin.xlane.f32.xlu0 %v315
    %v317 = vpop.xlane.xlu0 %316
    %v318 = vcvt.f32.s32 %v317
    %v319 = vcvt.f32.s32 %v313
    %v320 = vshll.u32 %v319, 16
    %v321 = vadd.s32 %v320, %v318
    %vm322 = vcmask 31768
    %323 = vst.msk [vmem:[%s2] sm:$0xff] %vm322, %v306
    %324 = vst.msk [vmem:[%s2 + $0x8] sm:$0xff] %vm322, %v321
    %vm325 = vcmp.eq.s32.totalorder %v43, %v306
    %vm326 = vcmp.eq.s32.totalorder %v43, %v321
    %v327 = vsel %vm325, 2147483648, %v256
    %v328 = vsel %vm326, 2147483648, %v257
    %vm329 = vcmp.eq.s32.totalorder %v327, 2147483648
    %vm330 = vcmp.eq.s32.totalorder %v328, 2147483648
    %v331 = vsel %vm329, 1, 0
    %v332 = vsel %vm330, 1, 0
    %333 = vst.msk [vmem:[%s1] sm:$0xff] %vm44, %v331
    %334 = vst.msk [vmem:[%s1 + $0x8] sm:$0xff] %vm44, %v332
    // Predicated region
    $region10: #{tpu_custom_call.1} parent=1 // pred_check
      _
    $region11: #{tpu_custom_call.1} parent=1 // pred_check_branch
      %336 = sbr.rel (0) target = $region13
    $region12: #{tpu_custom_call.1} parent=1 // pred_region
      _
    $region13: #{tpu_custom_call.1} parent=1 // pred_fallthru
      _
    // Predicated region
    $region14: #{tpu_custom_call.1} parent=1 // pred_check
      _
    $region15: #{tpu_custom_call.1} parent=1 // pred_check_branch
      %338 = sbr.rel (0) target = $region17
    $region16: #{tpu_custom_call.1} parent=1 // pred_region
      _
    $region17: #{tpu_custom_call.1} parent=1 // pred_fallthru
      _
    // Predicated region
    $region18: #{tpu_custom_call.1} parent=1 // pred_check
      _
    $region19: #{tpu_custom_call.1} parent=1 // pred_check_branch
      %340 = sbr.rel (0) target = $region21
    $region20: #{tpu_custom_call.1} parent=1 // pred_region
      _
    $region21: #{tpu_custom_call.1} parent=1 // pred_fallthru
      _
    // Predicated region
    $region22: #{tpu_custom_call.1} parent=1 // pred_check
      _
    $region23: #{tpu_custom_call.1} parent=1 // pred_check_branch
      %342 = sbr.rel (0) target = $region25
    $region24: #{tpu_custom_call.1} parent=1 // pred_region
      _
    $region25: #{tpu_custom_call.1} parent=1 // pred_fallthru
      _
    %343 = vsyncpa [#allocation3], 1

</llo_original>
